<compile_context>
chip_gen: v7x
topology: tpu7x:2x2x1
jax: 0.10.0
libtpu: 0.0.40
codegen_flags: <defaults>
</compile_context>

<pallas_src>
import math

import jax
import jax.numpy as jnp
from jax.experimental import pallas as pl
from jax.experimental.pallas import tpu as pltpu


def _banded_conv_weights(w, W):
    """PyTorch OIHW (C_out, C_in, 3, 3) -> fused band (3*W*C_in, W*C_out) f32.

    band[kh*W*Ci + wi*Ci + ci, wo*Co + co] = w[co, ci, kh, kw] with
    wi = wo + kw - 1 (zero when wi falls outside [0, W)).  This folds the
    three kw taps and the 'same' padding along W into the contraction and
    stacks the three kh taps along K, so each conv becomes ONE MXU matmul
    with K = 3*W*C_in instead of nine tiny drain/fill-dominated dots.
    """
    C_out, C_in, KH, KW = w.shape
    w_hwio = jnp.transpose(w, (2, 3, 1, 0)).astype(jnp.float32)   # (KH,KW,Ci,Co)
    wi = jnp.arange(W)
    wo = jnp.arange(W)
    kw = jnp.arange(KW)
    # sel[kw, wi, wo] = 1 iff wi == wo + kw - 1
    sel = (wi[None, :, None] == (wo[None, None, :] + kw[:, None, None] - 1))
    band = jnp.einsum("kxw,hkcd->hxcwd", sel.astype(jnp.float32), w_hwio)
    return band.reshape(KH * W * C_in, W * C_out)                 # (3*W*Ci, W*Co)


def _make_unet_block_kernel(H):
    def kernel(x_ref, w1_ref, b1_ref, w2_ref, b2_ref, o_ref):
        rows = x_ref.shape[0]                                  # static block rows
        row = jax.lax.broadcasted_iota(jnp.int32, (rows, 1), 0)
        not_top = (row % H) != 0          # row i-1 exists inside the same image
        not_bot = (row % H) != (H - 1)    # row i+1 exists inside the same image

        def band_conv(v32, wb_ref, b_ref):
            # kh = 0 / kh = 2 taps: sublane roll (XLU) + boundary mask (VPU).
            # pltpu.roll(v, +1, axis=0) puts row i-1 at row i (jnp.roll
            # convention); the wrapped rows are always masked off here, both
            # at block edges and at image boundaries inside a folded block.
            up = jnp.where(not_top, pltpu.roll(v32, 1, axis=0), 0.0)
            dn = jnp.where(not_bot, pltpu.roll(v32, rows - 1, axis=0), 0.0)
            # Fuse the three kh taps into ONE wide-K MXU matmul.
            taps = jnp.concatenate([up, v32, dn], axis=1).astype(wb_ref.dtype)
            acc = jnp.dot(taps, wb_ref[...], preferred_element_type=jnp.float32)
            # Bias + ReLU stay in f32 on the VPU (safe on v5e: no bf16 VPU).
            return jnp.maximum(acc + b_ref[...], 0.0)

        h1 = band_conv(x_ref[...].astype(jnp.float32), w1_ref, b1_ref)
        # NOTE: for large rows-per-block, stage h1 in an explicit VMEM scratch
        # instead of relying on register residency (controlled spill).
        h2 = band_conv(h1, w2_ref, b2_ref)
        o_ref[...] = h2.astype(o_ref.dtype)

    return kernel


def unet_block_forward(x_nchw, w1, b1, w2, b2, *,
                       compute_dtype=jnp.float32, images_per_block=None):
    """Forward pass matching the PyTorch UNetBlock.

    x_nchw : (N, C_in, H, W);  w1 : (C_out, C_in, 3, 3);  b1 : (C_out,)
    w2 : (C_out, C_out, 3, 3); b2 : (C_out,).  Returns (N, C_out, H, W).

    compute_dtype is the dtype of the MXU operands (x rows + weight bands);
    pass jnp.bfloat16 in production for 2x MXU rate and half the DMA bytes.
    """
    N, C_in, H, W = x_nchw.shape
    C_out = w1.shape[0]

    # ---- lane density: pad C_in so the x minor dim (W*C_in) is a multiple
    # of 128 lanes.  Zero channels contribute nothing -> free correctness-wise.
    unit = 128 // math.gcd(W, 128)
    C_in_p = ((C_in + unit - 1) // unit) * unit
    if C_in_p - C_in > max(8, C_in):      # avoid absurd padding for odd W
        C_in_p = C_in
    K1 = W * C_in_p
    K2 = W * C_out

    # ---- grid: >= 2 steps when the batch allows it so ("parallel",) can
    # shard across v7x's two TensorCores; per-step cost on v5e/v6e is ~0.35us.
    if images_per_block is None:
        images_per_block = N if N < 2 else N // 2
    images_per_block = max(1, min(images_per_block, N))
    while N % images_per_block:
        images_per_block -= 1
    if (images_per_block * H) % 8 and images_per_block != N:
        images_per_block = N              # keep block rows sublane-aligned
    rows = images_per_block * H
    n_blocks = N // images_per_block

    # ---- wrapper-side layout plumbing (one-time, static shapes) ----
    x_nhwc = jnp.transpose(x_nchw, (0, 2, 3, 1))
    if C_in_p != C_in:
        x_nhwc = jnp.pad(x_nhwc, ((0, 0), (0, 0), (0, 0), (0, C_in_p - C_in)))
        w1 = jnp.pad(w1, ((0, 0), (0, C_in_p - C_in), (0, 0), (0, 0)))
    x_rows = x_nhwc.reshape(N * H, K1).astype(compute_dtype)

    # NOTE: the bands grow as O(W^2*Ci*Co) with only 3/W of the column blocks
    # nonzero; for large W tile the lane axis by W-chunks (1-column halo)
    # before they stop fitting VMEM (v7x: 64 MiB/TC).
    w1_band = _banded_conv_weights(w1, W).astype(compute_dtype)   # (3*K1, K2)
    w2_band = _banded_conv_weights(w2, W).astype(compute_dtype)   # (3*K2, K2)
    b1_row = jnp.tile(b1.astype(jnp.float32), W).reshape(1, K2)
    b2_row = jnp.tile(b2.astype(jnp.float32), W).reshape(1, K2)

    # ---- VMEM budget from actual operand sizes (instead of hard-coded) ----
    isz = jnp.dtype(compute_dtype).itemsize
    band_bytes = (w1_band.size + w2_band.size) * isz + (b1_row.size + b2_row.size) * 4
    io_bytes = rows * (K1 * isz + K2 * 4)                  # one x block + one out block
    tmp_bytes = rows * (3 * K1 + 3 * K2 + 2 * K2) * 4      # in-kernel f32 temporaries
    needed = 2 * (band_bytes + io_bytes) + tmp_bytes       # double-buffering headroom
    vmem_limit = int(min(max(2 * needed, 16 * 2**20), 64 * 2**20))

    kernel = _make_unet_block_kernel(H)

    out_rows = pl.pallas_call(
        kernel,
        out_shape=jax.ShapeDtypeStruct((N * H, K2), x_nchw.dtype),
        grid_spec=pltpu.PrefetchScalarGridSpec(
            num_scalar_prefetch=0,
            grid=(n_blocks,),
            in_specs=[
                pl.BlockSpec((rows, K1), lambda i: (i, 0)),        # x rows
                pl.BlockSpec((3 * K1, K2), lambda i: (0, 0)),      # conv1 band
                pl.BlockSpec((1, K2), lambda i: (0, 0)),           # conv1 bias
                pl.BlockSpec((3 * K2, K2), lambda i: (0, 0)),      # conv2 band
                pl.BlockSpec((1, K2), lambda i: (0, 0)),           # conv2 bias
            ],
            out_specs=pl.BlockSpec((rows, K2), lambda i: (i, 0)),
        ),
        compiler_params=pltpu.CompilerParams(
            dimension_semantics=("parallel",),
            vmem_limit_bytes=vmem_limit,
        ),
    )(x_rows, w1_band, b1_row, w2_band, b2_row)

    # Lane-dense rows -> NCHW to match the PyTorch output convention.
    return jnp.transpose(out_rows.reshape(N, H, W, C_out), (0, 3, 1, 2))


def _reference_forward(x_nchw, w1, b1, w2, b2):
    """Pure-JAX reference using lax.conv (NCHW, OIHW), for the correctness check."""
    dn = jax.lax.conv_dimension_numbers(x_nchw.shape, w1.shape,
                                        ("NCHW", "OIHW", "NCHW"))
    y = jax.lax.conv_general_dilated(x_nchw, w1, (1, 1), ((1, 1), (1, 1)),
                                     dimension_numbers=dn)
    y = jnp.maximum(y + b1.reshape(1, -1, 1, 1), 0.0)
    dn2 = jax.lax.conv_dimension_numbers(y.shape, w2.shape,
                                         ("NCHW", "OIHW", "NCHW"))
    y = jax.lax.conv_general_dilated(y, w2, (1, 1), ((1, 1), (1, 1)),
                                     dimension_numbers=dn2)
    y = jnp.maximum(y + b2.reshape(1, -1, 1, 1), 0.0)
    return y


if __name__ == "__main__":
    # Small deterministic shapes: batch=2, in_ch=4, out_ch=8, spatial=16x16.
    N, C_in, C_out, H, W = 2, 4, 8, 16, 16

    key = jax.random.PRNGKey(0)
    kx, kw1, kb1, kw2, kb2 = jax.random.split(key, 5)

    x = jax.random.normal(kx, (N, C_in, H, W), dtype=jnp.float32)
    # Deterministic synthetic parameters (not loaded from a checkpoint).
    w1 = jax.random.normal(kw1, (C_out, C_in, 3, 3), dtype=jnp.float32) * 0.1
    b1 = jax.random.normal(kb1, (C_out,), dtype=jnp.float32) * 0.1
    w2 = jax.random.normal(kw2, (C_out, C_out, 3, 3), dtype=jnp.float32) * 0.1
    b2 = jax.random.normal(kb2, (C_out,), dtype=jnp.float32) * 0.1

    ref = jax.block_until_ready(_reference_forward(x, w1, b1, w2, b2))

    # f32 MXU path: tight reference check.
    out = jax.block_until_ready(unet_block_forward(x, w1, b1, w2, b2))
    assert out.shape == (N, C_out, H, W)
    assert jnp.max(jnp.abs(out - ref)) < 1e-4, "Pallas f32 output mismatch vs reference"

    # bf16 MXU path (the production default on v5e/v6e/v7x): loose check only,
    # since the MXU operands are rounded to bf16.
    out_bf16 = jax.block_until_ready(
        unet_block_forward(x, w1, b1, w2, b2, compute_dtype=jnp.bfloat16))
    assert out_bf16.shape == (N, C_out, H, W)
    assert jnp.max(jnp.abs(out_bf16 - ref)) < 2e-1, "Pallas bf16 output mismatch vs reference"

    print("KERNEL_OK")
</pallas_src>

<mosaic_0001>
module attributes {stable_mosaic.version = 11 : i64} {
  func.func @kernel(%arg0: i32, %arg1: memref<16x128xf32, #tpu.memory_space<vmem>>, %arg2: memref<384x128xf32, #tpu.memory_space<vmem>>, %arg3: memref<1x128xf32, #tpu.memory_space<vmem>>, %arg4: memref<384x128xf32, #tpu.memory_space<vmem>>, %arg5: memref<1x128xf32, #tpu.memory_space<vmem>>, %arg6: memref<16x128xf32, #tpu.memory_space<vmem>>) attributes {dimension_semantics = [#tpu.dimension_semantics<parallel>], iteration_bounds = array<i64: 2>, scalar_prefetch = 0 : i64, scratch_operands = 0 : i64, tpu.core_type = #tpu.core_type<tc>, window_params = [{transform_indices = @transform_0, window_bounds = array<i64: 16, 128>}, {pipeline_mode = #tpu.pipeline_mode<synchronous>, transform_indices = @transform_1, window_bounds = array<i64: 384, 128>}, {pipeline_mode = #tpu.pipeline_mode<synchronous>, transform_indices = @transform_2, window_bounds = array<i64: 1, 128>}, {pipeline_mode = #tpu.pipeline_mode<synchronous>, transform_indices = @transform_3, window_bounds = array<i64: 384, 128>}, {pipeline_mode = #tpu.pipeline_mode<synchronous>, transform_indices = @transform_4, window_bounds = array<i64: 1, 128>}, {transform_indices = @transform_5, window_bounds = array<i64: 16, 128>}]} {
    %0 = tpu.iota {dimensions = array<i32: 0>} : vector<16x1xi32>
    %c16_i32 = arith.constant 16 : i32
    %c0_i32 = arith.constant 0 : i32
    %1 = arith.cmpi eq, %c16_i32, %c0_i32 : i32
    %c1_i32 = arith.constant 1 : i32
    %2 = arith.select %1, %c1_i32, %c16_i32 : i32
    %3 = vector.broadcast %2 : i32 to vector<16x1xi32>
    %4 = arith.remsi %0, %3 : vector<16x1xi32>
    %c0_i32_0 = arith.constant 0 : i32
    %5 = vector.broadcast %c0_i32_0 : i32 to vector<16x1xi32>
    %6 = arith.cmpi ne, %4, %5 : vector<16x1xi32>
    %c0_i32_1 = arith.constant 0 : i32
    %7 = vector.broadcast %c0_i32_1 : i32 to vector<16x1xi32>
    %8 = arith.cmpi slt, %4, %7 : vector<16x1xi32>
    %c0_i32_2 = arith.constant 0 : i32
    %9 = arith.cmpi slt, %2, %c0_i32_2 : i32
    %10 = vector.broadcast %9 : i1 to vector<16x1xi1>
    %11 = vector.broadcast %10 : vector<16x1xi1> to vector<16x1xi1>
    %12 = arith.xori %8, %11 : vector<16x1xi1>
    %13 = arith.andi %12, %6 : vector<16x1xi1>
    %14 = vector.broadcast %2 : i32 to vector<16x1xi32>
    %15 = arith.addi %4, %14 : vector<16x1xi32>
    %16 = arith.select %13, %15, %4 : vector<16x1xi1>, vector<16x1xi32>
    %c0_i32_3 = arith.constant 0 : i32
    %17 = vector.broadcast %c0_i32_3 : i32 to vector<16x1xi32>
    %18 = arith.cmpi ne, %16, %17 : vector<16x1xi32>
    %c16_i32_4 = arith.constant 16 : i32
    %c0_i32_5 = arith.constant 0 : i32
    %19 = arith.cmpi eq, %c16_i32_4, %c0_i32_5 : i32
    %c1_i32_6 = arith.constant 1 : i32
    %20 = arith.select %19, %c1_i32_6, %c16_i32_4 : i32
    %21 = vector.broadcast %20 : i32 to vector<16x1xi32>
    %22 = arith.remsi %0, %21 : vector<16x1xi32>
    %c0_i32_7 = arith.constant 0 : i32
    %23 = vector.broadcast %c0_i32_7 : i32 to vector<16x1xi32>
    %24 = arith.cmpi ne, %22, %23 : vector<16x1xi32>
    %c0_i32_8 = arith.constant 0 : i32
    %25 = vector.broadcast %c0_i32_8 : i32 to vector<16x1xi32>
    %26 = arith.cmpi slt, %22, %25 : vector<16x1xi32>
    %c0_i32_9 = arith.constant 0 : i32
    %27 = arith.cmpi slt, %20, %c0_i32_9 : i32
    %28 = vector.broadcast %27 : i1 to vector<16x1xi1>
    %29 = vector.broadcast %28 : vector<16x1xi1> to vector<16x1xi1>
    %30 = arith.xori %26, %29 : vector<16x1xi1>
    %31 = arith.andi %30, %24 : vector<16x1xi1>
    %32 = vector.broadcast %20 : i32 to vector<16x1xi32>
    %33 = arith.addi %22, %32 : vector<16x1xi32>
    %34 = arith.select %31, %33, %22 : vector<16x1xi1>, vector<16x1xi32>
    %c15_i32 = arith.constant 15 : i32
    %35 = vector.broadcast %c15_i32 : i32 to vector<16x1xi32>
    %36 = arith.cmpi ne, %34, %35 : vector<16x1xi32>
    %c0 = arith.constant 0 : index
    %c0_10 = arith.constant 0 : index
    %37 = vector.load %arg1[%c0, %c0_10] : memref<16x128xf32, #tpu.memory_space<vmem>>, vector<16x128xf32>
    %c1_i32_11 = arith.constant 1 : i32
    %38 = tpu.dynamic_rotate %37 by %c1_i32_11 dim 0 : vector<16x128xf32>, i32 -> vector<16x128xf32>
    %cst = arith.constant 0.000000e+00 : f32
    %39 = vector.shape_cast %18 : vector<16x1xi1> to vector<16x1xi1>
    %40 = vector.broadcast %39 : vector<16x1xi1> to vector<16x128xi1>
    %41 = vector.broadcast %cst : f32 to vector<16x128xf32>
    %42 = arith.select %40, %38, %41 : vector<16x128xi1>, vector<16x128xf32>
    %c15_i32_12 = arith.constant 15 : i32
    %43 = tpu.dynamic_rotate %37 by %c15_i32_12 dim 0 : vector<16x128xf32>, i32 -> vector<16x128xf32>
    %cst_13 = arith.constant 0.000000e+00 : f32
    %44 = vector.shape_cast %36 : vector<16x1xi1> to vector<16x1xi1>
    %45 = vector.broadcast %44 : vector<16x1xi1> to vector<16x128xi1>
    %46 = vector.broadcast %cst_13 : f32 to vector<16x128xf32>
    %47 = arith.select %45, %43, %46 : vector<16x128xi1>, vector<16x128xf32>
    %48 = tpu.concatenate %42, %37, %47 in 1 : vector<16x128xf32>, vector<16x128xf32>, vector<16x128xf32> -> vector<16x384xf32>
    %c0_14 = arith.constant 0 : index
    %c0_15 = arith.constant 0 : index
    %49 = vector.load %arg2[%c0_14, %c0_15] : memref<384x128xf32, #tpu.memory_space<vmem>>, vector<384x128xf32>
    %cst_16 = arith.constant dense<0.000000e+00> : vector<16x128xf32>
    %50 = tpu.matmul %48, %49, %cst_16 {dimension_numbers = #tpu.dot_dimension_numbers<[1], [0], [0], [1], [0, 0, 1, 1], [], []>} : vector<16x384xf32>, vector<384x128xf32>, vector<16x128xf32> -> vector<16x128xf32>
    %c0_17 = arith.constant 0 : index
    %c0_18 = arith.constant 0 : index
    %51 = vector.load %arg3[%c0_17, %c0_18] : memref<1x128xf32, #tpu.memory_space<vmem>>, vector<1x128xf32>
    %52 = vector.broadcast %51 : vector<1x128xf32> to vector<16x128xf32>
    %53 = arith.addf %50, %52 : vector<16x128xf32>
    %cst_19 = arith.constant 0.000000e+00 : f32
    %54 = vector.broadcast %cst_19 : f32 to vector<16x128xf32>
    %55 = arith.maximumf %53, %54 : vector<16x128xf32>
    %c1_i32_20 = arith.constant 1 : i32
    %56 = tpu.dynamic_rotate %55 by %c1_i32_20 dim 0 : vector<16x128xf32>, i32 -> vector<16x128xf32>
    %cst_21 = arith.constant 0.000000e+00 : f32
    %57 = vector.shape_cast %18 : vector<16x1xi1> to vector<16x1xi1>
    %58 = vector.broadcast %57 : vector<16x1xi1> to vector<16x128xi1>
    %59 = vector.broadcast %cst_21 : f32 to vector<16x128xf32>
    %60 = arith.select %58, %56, %59 : vector<16x128xi1>, vector<16x128xf32>
    %c15_i32_22 = arith.constant 15 : i32
    %61 = tpu.dynamic_rotate %55 by %c15_i32_22 dim 0 : vector<16x128xf32>, i32 -> vector<16x128xf32>
    %cst_23 = arith.constant 0.000000e+00 : f32
    %62 = vector.shape_cast %36 : vector<16x1xi1> to vector<16x1xi1>
    %63 = vector.broadcast %62 : vector<16x1xi1> to vector<16x128xi1>
    %64 = vector.broadcast %cst_23 : f32 to vector<16x128xf32>
    %65 = arith.select %63, %61, %64 : vector<16x128xi1>, vector<16x128xf32>
    %66 = tpu.concatenate %60, %55, %65 in 1 : vector<16x128xf32>, vector<16x128xf32>, vector<16x128xf32> -> vector<16x384xf32>
    %c0_24 = arith.constant 0 : index
    %c0_25 = arith.constant 0 : index
    %67 = vector.load %arg4[%c0_24, %c0_25] : memref<384x128xf32, #tpu.memory_space<vmem>>, vector<384x128xf32>
    %cst_26 = arith.constant dense<0.000000e+00> : vector<16x128xf32>
    %68 = tpu.matmul %66, %67, %cst_26 {dimension_numbers = #tpu.dot_dimension_numbers<[1], [0], [0], [1], [0, 0, 1, 1], [], []>} : vector<16x384xf32>, vector<384x128xf32>, vector<16x128xf32> -> vector<16x128xf32>
    %c0_27 = arith.constant 0 : index
    %c0_28 = arith.constant 0 : index
    %69 = vector.load %arg5[%c0_27, %c0_28] : memref<1x128xf32, #tpu.memory_space<vmem>>, vector<1x128xf32>
    %70 = vector.broadcast %69 : vector<1x128xf32> to vector<16x128xf32>
    %71 = arith.addf %68, %70 : vector<16x128xf32>
    %cst_29 = arith.constant 0.000000e+00 : f32
    %72 = vector.broadcast %cst_29 : f32 to vector<16x128xf32>
    %73 = arith.maximumf %71, %72 : vector<16x128xf32>
    %c0_30 = arith.constant 0 : index
    %c0_31 = arith.constant 0 : index
    %74 = vector.load %arg6[%c0_30, %c0_31] : memref<16x128xf32, #tpu.memory_space<vmem>>, vector<16x128xf32>
    tpu.vector_store %arg6[%c0_30, %c0_31], %73 {strides = array<i32>} : memref<16x128xf32, #tpu.memory_space<vmem>>, vector<16x128xf32>,
    return
  }
  func.func @transform_0(%arg0: i32) -> (i32, i32) {
    %c0_i32 = arith.constant 0 : i32
    %c0_i32_0 = arith.constant 0 : i32
    return %arg0, %c0_i32 : i32, i32
  }
  func.func @transform_1(%arg0: i32) -> (i32, i32) {
    %c0_i32 = arith.constant 0 : i32
    %c0_i32_0 = arith.constant 0 : i32
    %c0_i32_1 = arith.constant 0 : i32
    return %c0_i32, %c0_i32_0 : i32, i32
  }
  func.func @transform_2(%arg0: i32) -> (i32, i32) {
    %c0_i32 = arith.constant 0 : i32
    %c0_i32_0 = arith.constant 0 : i32
    %c0_i32_1 = arith.constant 0 : i32
    return %c0_i32, %c0_i32_0 : i32, i32
  }
  func.func @transform_3(%arg0: i32) -> (i32, i32) {
    %c0_i32 = arith.constant 0 : i32
    %c0_i32_0 = arith.constant 0 : i32
    %c0_i32_1 = arith.constant 0 : i32
    return %c0_i32, %c0_i32_0 : i32, i32
  }
  func.func @transform_4(%arg0: i32) -> (i32, i32) {
    %c0_i32 = arith.constant 0 : i32
    %c0_i32_0 = arith.constant 0 : i32
    %c0_i32_1 = arith.constant 0 : i32
    return %c0_i32, %c0_i32_0 : i32, i32
  }
  func.func @transform_5(%arg0: i32) -> (i32, i32) {
    %c0_i32 = arith.constant 0 : i32
    %c0_i32_0 = arith.constant 0 : i32
    return %arg0, %c0_i32 : i32, i32
  }
}

</mosaic_0001>

<llo_original>
// kernel: tpu_custom_call.1
$region0: #{tpu_custom_call.1}
  #allocation0 [shape = 'u32[]', space=smem, size = 0x4, offset = 0x4, fixed_abs, tag = 'smem constant byte address 0x4 - core index']
  #allocation1 [shape = 'u32[144,128]{1,0:T(1,128)}', space=vmem, size = 0x12000, scoped, tag = 'internal scratch']
  %s0 = inlined_call_operand.hbm [shape: f32[32,128], index: 0, kind: input, shape index: {}]
  %s1 = inlined_call_operand.hbm [shape: f32[384,128], index: 1, kind: input, shape index: {}]
  %s2 = inlined_call_operand.vmem [shape: f32[1,128], index: 2, kind: input, shape index: {}]
  %s3 = inlined_call_operand.hbm [shape: f32[384,128], index: 3, kind: input, shape index: {}]
  %s4 = inlined_call_operand.vmem [shape: f32[1,128], index: 4, kind: input, shape index: {}]
  %s5 = inlined_call_operand.hbm [shape: f32[32,128], index: 5, kind: output, shape index: {}]
  %s6 = sld [smem:[#allocation0]]
  $region65: #{tpu_custom_call.1} parent=0
    _
  %s8 = ssub.s32 1, %s6
  %s9 = scalar_select 0, %s8, %s6
  $region1: #{tpu_custom_call.1} parent=0
    #allocation2 [shape = 'u8[16384]{0}', space=vmem, size = 0x4000, scoped, tag = 'input window, operand 0']
    #allocation3 [shape = 's32[2]{0}', space=sflag, size = 0x8, scoped, tag = 'scoped memory for tpu_custom_call.1']
    #allocation4 [shape = 's32[2]{0}', space=sflag, size = 0x8, scoped, tag = 'scoped memory for tpu_custom_call.1']
    #allocation5 [shape = 'u8[196608]{0}', space=vmem, size = 0x30000, scoped, tag = 'input window, operand 1, single buffered']
    #allocation6 [shape = 's32[1]{0}', space=sflag, size = 0x4, scoped, tag = 'scoped memory for tpu_custom_call.1']
    #allocation7 [shape = 'u8[196608]{0}', space=vmem, size = 0x30000, scoped, tag = 'input window, operand 3, single buffered']
    #allocation8 [shape = 'u8[16384]{0}', space=vmem, size = 0x4000, scoped, tag = 'output window, operand 0']
    %10 = vsyncpa [#allocation3], 0
    %s11 = scalar_lea.sflag [#allocation3], 1
    %12 = vsyncpa %s11, 0
    %13 = vsyncpa [#allocation6], 0
    %14 = vsyncpa [#allocation4], 0
    %s15 = scalar_lea.sflag [#allocation4], 1
    %16 = vsyncpa %s15, 0
    loop: start=0, step=1, limit=4
    $region2: #{tpu_custom_call.1} parent=1 // loop_pre_header
      _
    $region3: #{tpu_custom_call.1} parent=1 // loop_header
      %s18 = sphi 0, %s22
      %p19 = scmp.ge.s32.totalorder %s18, 4
      %s28 = sphi 0, %s30
      %s31 = sphi 0, %s28
      %s32 = sphi 0, %s31
      %s48 = sphi 0, %s32
      %s52 = sphi 0, %s52
      %s54 = sphi 0, %s52
      %s55 = sphi 0, %s54
      %s69 = sphi 0, %s55
      %s73 = sphi 0, %s73
      %s75 = sphi 0, %s73
      %s76 = sphi 0, %s75
      %s90 = sphi 0, %s76
      %s94 = sphi 0, %s94
      %s96 = sphi 0, %s94
      %s97 = sphi 0, %s96
      %s111 = sphi 0, %s97
      %s115 = sphi 0, %s115
      %s117 = sphi 0, %s115
      %s118 = sphi 0, %s117
      %s132 = sphi 0, %s118
      %s138 = sphi 0, %s140
      %s141 = sphi 0, %s138
      %s142 = sphi 0, %s141
      %s158 = sphi 0, %s142
    $region4: #{tpu_custom_call.1} parent=1 // loop_header_branch
      %21 = sbr.rel (%p19) target = $region8
    $region5: #{tpu_custom_call.1} parent=1 // loop_body
      %s23 = ssub.s32 %s18, 1
      %s24 = ssub.s32 %s18, 2
      %s25 = sadd.s32 %s18, 1
      %s26 = ssub.s32 %s18, %s25
      %p27 = scmp.eq.s32.totalorder %s26, 0
      %s29 = sadd.s32 %s28, 1
      %s30 = scalar_select %p27, %s28, %s29
      %p33 = pneg %p27
      %p34 = scmp.eq.s32.totalorder %s18, 1
      %p35 = por %p33, %p34
      %p36 = scmp.ne.s32.totalorder %s28, %s31
      %p37 = scmp.eq.s32.totalorder %s18, 0
      %p38 = por %p36, %p37
      %p39 = scmp.ne.s32.totalorder %s28, %s31
      %p40 = scmp.eq.s32.totalorder %s23, 1
      %p41 = por %p39, %p40
      %p42 = scmp.ne.s32.totalorder %s31, %s32
      %p43 = scmp.eq.s32.totalorder %s23, 0
      %p44 = por %p42, %p43
      %p45 = scmp.ne.s32.totalorder %s31, %s32
      %p46 = scmp.eq.s32.totalorder %s24, 1
      %p47 = por %p45, %p46
      %p49 = scmp.ne.s32.totalorder %s32, %s48
      %p50 = scmp.eq.s32.totalorder %s24, 0
      %p51 = por %p49, %p50
      %s53 = sadd.s32 %s52, 1
      %p56 = scmp.eq.s32.totalorder %s18, 1
      %p57 = scmp.ne.s32.totalorder %s52, %s54
      %p58 = scmp.eq.s32.totalorder %s18, 0
      %p59 = por %p57, %p58
      %p60 = scmp.ne.s32.totalorder %s52, %s54
      %p61 = scmp.eq.s32.totalorder %s23, 1
      %p62 = por %p60, %p61
      %p63 = scmp.ne.s32.totalorder %s54, %s55
      %p64 = scmp.eq.s32.totalorder %s23, 0
      %p65 = por %p63, %p64
      %p66 = scmp.ne.s32.totalorder %s54, %s55
      %p67 = scmp.eq.s32.totalorder %s24, 1
      %p68 = por %p66, %p67
      %p70 = scmp.ne.s32.totalorder %s55, %s69
      %p71 = scmp.eq.s32.totalorder %s24, 0
      %p72 = por %p70, %p71
      %s74 = sadd.s32 %s73, 1
      %p77 = scmp.eq.s32.totalorder %s18, 1
      %p78 = scmp.ne.s32.totalorder %s73, %s75
      %p79 = scmp.eq.s32.totalorder %s18, 0
      %p80 = por %p78, %p79
      %p81 = scmp.ne.s32.totalorder %s73, %s75
      %p82 = scmp.eq.s32.totalorder %s23, 1
      %p83 = por %p81, %p82
      %p84 = scmp.ne.s32.totalorder %s75, %s76
      %p85 = scmp.eq.s32.totalorder %s23, 0
      %p86 = por %p84, %p85
      %p87 = scmp.ne.s32.totalorder %s75, %s76
      %p88 = scmp.eq.s32.totalorder %s24, 1
      %p89 = por %p87, %p88
      %p91 = scmp.ne.s32.totalorder %s76, %s90
      %p92 = scmp.eq.s32.totalorder %s24, 0
      %p93 = por %p91, %p92
      %s95 = sadd.s32 %s94, 1
      %p98 = scmp.eq.s32.totalorder %s18, 1
      %p99 = scmp.ne.s32.totalorder %s94, %s96
      %p100 = scmp.eq.s32.totalorder %s18, 0
      %p101 = por %p99, %p100
      %p102 = scmp.ne.s32.totalorder %s94, %s96
      %p103 = scmp.eq.s32.totalorder %s23, 1
      %p104 = por %p102, %p103
      %p105 = scmp.ne.s32.totalorder %s96, %s97
      %p106 = scmp.eq.s32.totalorder %s23, 0
      %p107 = por %p105, %p106
      %p108 = scmp.ne.s32.totalorder %s96, %s97
      %p109 = scmp.eq.s32.totalorder %s24, 1
      %p110 = por %p108, %p109
      %p112 = scmp.ne.s32.totalorder %s97, %s111
      %p113 = scmp.eq.s32.totalorder %s24, 0
      %p114 = por %p112, %p113
      %s116 = sadd.s32 %s115, 1
      %p119 = scmp.eq.s32.totalorder %s18, 1
      %p120 = scmp.ne.s32.totalorder %s115, %s117
      %p121 = scmp.eq.s32.totalorder %s18, 0
      %p122 = por %p120, %p121
      %p123 = scmp.ne.s32.totalorder %s115, %s117
      %p124 = scmp.eq.s32.totalorder %s23, 1
      %p125 = por %p123, %p124
      %p126 = scmp.ne.s32.totalorder %s117, %s118
      %p127 = scmp.eq.s32.totalorder %s23, 0
      %p128 = por %p126, %p127
      %p129 = scmp.ne.s32.totalorder %s117, %s118
      %p130 = scmp.eq.s32.totalorder %s24, 1
      %p131 = por %p129, %p130
      %p133 = scmp.ne.s32.totalorder %s118, %s132
      %p134 = scmp.eq.s32.totalorder %s24, 0
      %p135 = por %p133, %p134
      %s136 = ssub.s32 %s18, %s25
      %p137 = scmp.eq.s32.totalorder %s136, 0
      %s139 = sadd.s32 %s138, 1
      %s140 = scalar_select %p137, %s138, %s139
      %p143 = pneg %p137
      %p144 = scmp.eq.s32.totalorder %s18, 1
      %p145 = por %p143, %p144
      %p146 = scmp.ne.s32.totalorder %s138, %s141
      %p147 = scmp.eq.s32.totalorder %s18, 0
      %p148 = por %p146, %p147
      %p149 = scmp.ne.s32.totalorder %s138, %s141
      %p150 = scmp.eq.s32.totalorder %s23, 1
      %p151 = por %p149, %p150
      %p152 = scmp.ne.s32.totalorder %s141, %s142
      %p153 = scmp.eq.s32.totalorder %s23, 0
      %p154 = por %p152, %p153
      %p155 = scmp.ne.s32.totalorder %s141, %s142
      %p156 = scmp.eq.s32.totalorder %s24, 1
      %p157 = por %p155, %p156
      %p159 = scmp.ne.s32.totalorder %s142, %s158
      %p160 = scmp.eq.s32.totalorder %s24, 0
      %p161 = por %p159, %p160
      %p162 = scmp.le.s32.totalorder 1, %s18
      %p163 = scmp.lt.s32.totalorder %s18, 3
      %p164 = pnand %p162, %p163
      %p165 = pneg %p164
      // Predicated region
      $region9: #{tpu_custom_call.1} parent=5 // pred_check
        _
      $region10: #{tpu_custom_call.1} parent=5 // pred_check_branch
        %167 = sbr.rel (%p164) target = $region12
      $region11: #{tpu_custom_call.1} parent=5 // pred_region
        %s168 = ssub.s32 %s18, 1
        // Predicated region
        $region13: #{tpu_custom_call.1} parent=11 // pred_check
          %p169 = pneg %p65
        $region14: #{tpu_custom_call.1} parent=11 // pred_check_branch
          %171 = sbr.rel (%p169) target = $region16
        $region15: #{tpu_custom_call.1} parent=11 // pred_region
          %s173 = ssub.s32 6144, 6144
          %174 = vsyncadd [#allocation6], %s173
          %s175 = sshll.u32 [#allocation5], 4
          %s176 = int_to_ptr.vmem [resolvable:$true] %s175
          %181 = dma.hbm_to_vmem [thread:$0]  %s1, 6144, %s176, [#allocation6], 128, 128, 8
        $region16: #{tpu_custom_call.1} parent=11 // pred_fallthru
          _
        // Predicated region
        $region17: #{tpu_custom_call.1} parent=11 // pred_check
          %p182 = pneg %p86
        $region18: #{tpu_custom_call.1} parent=11 // pred_check_branch
          %184 = sbr.rel (%p182) target = $region20
        $region19: #{tpu_custom_call.1} parent=11 // pred_region
          _
        $region20: #{tpu_custom_call.1} parent=11 // pred_fallthru
          _
        // Predicated region
        $region21: #{tpu_custom_call.1} parent=11 // pred_check
          %p185 = pneg %p107
        $region22: #{tpu_custom_call.1} parent=11 // pred_check_branch
          %187 = sbr.rel (%p185) target = $region24
        $region23: #{tpu_custom_call.1} parent=11 // pred_region
          %s189 = ssub.s32 6144, 6144
          %190 = vsyncadd [#allocation6], %s189
          %s191 = sshll.u32 [#allocation7], 4
          %s192 = int_to_ptr.vmem [resolvable:$true] %s191
          %197 = dma.hbm_to_vmem [thread:$0]  %s3, 6144, %s192, [#allocation6], 128, 128, 8
        $region24: #{tpu_custom_call.1} parent=11 // pred_fallthru
          _
        // Predicated region
        $region25: #{tpu_custom_call.1} parent=11 // pred_check
          %p198 = pneg %p128
        $region26: #{tpu_custom_call.1} parent=11 // pred_check_branch
          %200 = sbr.rel (%p198) target = $region28
        $region27: #{tpu_custom_call.1} parent=11 // pred_region
          _
        $region28: #{tpu_custom_call.1} parent=11 // pred_fallthru
          _
      $region12: #{tpu_custom_call.1} parent=5 // pred_fallthru
        _
      %p201 = scmp.lt.s32.totalorder %s18, 2
      // Predicated region
      $region29: #{tpu_custom_call.1} parent=5 // pred_check
        %p202 = pneg %p201
      $region30: #{tpu_custom_call.1} parent=5 // pred_check_branch
        %204 = sbr.rel (%p202) target = $region32
      $region31: #{tpu_custom_call.1} parent=5 // pred_region
        // Predicated region
        $region33: #{tpu_custom_call.1} parent=31 // pred_check
          %p205 = pneg %p38
        $region34: #{tpu_custom_call.1} parent=31 // pred_check_branch
          %207 = sbr.rel (%p205) target = $region36
        $region35: #{tpu_custom_call.1} parent=31 // pred_region
          %s208 = sand.u32 %s28, 1
          %s209 = scalar_lea.sflag [#allocation3], %s208
          %s210 = sand.u32 %s28, 1
          %s211 = smul.addr %s210, 16
          %s212 = scalar_lea.vmem [#allocation2], %s211
          %s213 = smul.u32 2, %s18
          %s215 = ssub.s32 256, 256
          %216 = vsyncadd %s209, %s215
          %s217 = smul.addr %s213, 128
          %s218 = scalar_lea.hbm %s0, %s217
          %s219 = sshll.u32 %s212, 4
          %s220 = int_to_ptr.vmem [resolvable:$true] %s219
          %225 = dma.hbm_to_vmem [thread:$0]  %s218, 256, %s220, %s209, 128, 128, 8
        $region36: #{tpu_custom_call.1} parent=31 // pred_fallthru
          _
      $region32: #{tpu_custom_call.1} parent=5 // pred_fallthru
        _
      %p226 = scmp.le.s32.totalorder 1, %s18
      %p227 = scmp.lt.s32.totalorder %s18, 3
      %p228 = pnand %p226, %p227
      %p229 = pneg %p228
      // Predicated region
      $region37: #{tpu_custom_call.1} parent=5 // pred_check
        _
      $region38: #{tpu_custom_call.1} parent=5 // pred_check_branch
        %231 = sbr.rel (%p228) target = $region40
      $region39: #{tpu_custom_call.1} parent=5 // pred_region
        %s232 = ssub.s32 %s18, 1
        %s233 = sand.u32 %s31, 1
        %s234 = scalar_lea.sflag [#allocation3], %s233
        %s235 = sand.u32 %s31, 1
        %s236 = smul.addr %s235, 16
        %s237 = scalar_lea.vmem [#allocation2], %s236
        // Predicated region
        $region41: #{tpu_custom_call.1} parent=39 // pred_check
          %p238 = pneg %p44
        $region42: #{tpu_custom_call.1} parent=39 // pred_check_branch
          %240 = sbr.rel (%p238) target = $region44
        $region43: #{tpu_custom_call.1} parent=39 // pred_region
          %241 = dma.done %s234, 256
        $region44: #{tpu_custom_call.1} parent=39 // pred_fallthru
          _
        // Predicated region
        $region45: #{tpu_custom_call.1} parent=39 // pred_check
          %p242 = pneg %p65
        $region46: #{tpu_custom_call.1} parent=39 // pred_check_branch
          %244 = sbr.rel (%p242) target = $region48
        $region47: #{tpu_custom_call.1} parent=39 // pred_region
          %245 = dma.done [#allocation6], 6144
        $region48: #{tpu_custom_call.1} parent=39 // pred_fallthru
          _
        // Predicated region
        $region49: #{tpu_custom_call.1} parent=39 // pred_check
          %p246 = pneg %p107
        $region50: #{tpu_custom_call.1} parent=39 // pred_check_branch
          %248 = sbr.rel (%p246) target = $region52
        $region51: #{tpu_custom_call.1} parent=39 // pred_region
          %249 = dma.done [#allocation6], 6144
        $region52: #{tpu_custom_call.1} parent=39 // pred_fallthru
          _
        %s250 = sand.u32 %s31, 1
        %s251 = scalar_lea.sflag [#allocation3], %s250
        %s252 = sand.u32 %s31, 1
        %s253 = smul.addr %s252, 16
        %s254 = scalar_lea.vmem [#allocation2], %s253
        %p255 = pneg %p44
        %p256 = pneg %p41
        %p257 = pneg %p65
        %p258 = pneg %p62
        %p259 = pneg %p86
        %p260 = pneg %p83
        %p261 = pneg %p107
        %p262 = pneg %p104
        %p263 = pneg %p128
        %p264 = pneg %p125
        %p265 = pneg %p154
        %p266 = pneg %p151
        %s267 = sand.u32 %s141, 1
        %s268 = scalar_lea.sflag [#allocation4], %s267
        %s269 = sand.u32 %s141, 1
        %s270 = smul.addr %s269, 16
        %s271 = scalar_lea.vmem [#allocation8], %s270
        %s272 = smul.u32 2, %s23
        %s273 = smul.u32 2, %s23
        %v274 = vlaneseq
        %v275 = vshrl.u32 %v274, 7
        %v276 = vadd.s32 %v275, 8
        %vm277 = vcmp.lt.s32.totalorder %v275, 0
        %v278 = vsub.s32 0, %v275
        %v279 = vsel %vm277, %v278, %v275
        %v280 = vshrl.u32 %v279, 4
        %v281 = vand.u32 %v279, 15
        %v282 = vsub.s32 0, %v281
        %v283 = vsel %vm277, %v282, %v281
        %vm284 = vcmp.lt.s32.totalorder %v276, 0
        %v285 = vsub.s32 0, %v276
        %v286 = vsel %vm284, %v285, %v276
        %v287 = vshrl.u32 %v286, 4
        %v288 = vand.u32 %v286, 15
        %v289 = vsub.s32 0, %v288
        %v290 = vsel %vm284, %v289, %v288
        %vm291 = vcmp.ne.s32.totalorder %v283, 0
        %vm292 = vcmp.ne.s32.totalorder %v290, 0
        %vm293 = vcmp.lt.s32.totalorder %v283, 0
        %vm294 = vcmp.lt.s32.totalorder %v290, 0
        %vm295 = vmand %vm293, %vm291
        %vm296 = vmand %vm294, %vm292
        %v297 = vadd.s32 %v283, 16
        %v298 = vadd.s32 %v290, 16
        %v299 = vsel %vm295, %v297, %v283
        %v300 = vsel %vm296, %v298, %v290
        %vm301 = vcmp.ne.s32.totalorder %v299, 0
        %vm302 = vcmp.ne.s32.totalorder %v300, 0
        %vm303 = vcmp.ne.s32.totalorder %v299, 15
        %vm304 = vcmp.ne.s32.totalorder %v300, 15
        %v305 = vld [vmem:[%s237] sm:$0xff]
        %v306 = vld [vmem:[%s237 + $0x8] sm:$0xff]
        %v307 = vrot.slane %v305, 7
        %v308 = vrot.slane %v306, 7
        %vm309 = vcmp.lt.s32.totalorder %v275, 1
        %v310 = vsel %vm309, %v307, %v308
        %v311 = vsel %vm309, %v308, %v307
        %v312 = vsel %vm301, 1, 0
        %v313 = vsel %vm302, 1, 0
        %vm314 = vcmp.eq.s32.totalorder %v312, 1
        %vm315 = vcmp.eq.s32.totalorder %v313, 1
        %v316 = vsel %vm314, %v311, 0.0
        %v317 = vsel %vm315, %v310, 0.0
        %v318 = vrot.slane %v305, 1
        %v319 = vrot.slane %v306, 1
        %vm320 = vcmp.lt.s32.totalorder %v275, 7
        %v321 = vsel %vm320, %v318, %v319
        %v322 = vsel %vm320, %v319, %v318
        %v323 = vsel %vm303, 1, 0
        %v324 = vsel %vm304, 1, 0
        %vm325 = vcmp.eq.s32.totalorder %v323, 1
        %vm326 = vcmp.eq.s32.totalorder %v324, 1
        %v327 = vsel %vm325, %v321, 0.0
        %v328 = vsel %vm326, %v322, 0.0
        %v329 = vld [vmem:[#allocation5] sm:$0xff]
        %v330 = vld [vmem:[#allocation5 + $0x8] sm:$0xff]
        %v331 = vld [vmem:[#allocation5 + $0x10] sm:$0xff]
        %v332 = vld [vmem:[#allocation5 + $0x18] sm:$0xff]
        %v333 = vld [vmem:[#allocation5 + $0x20] sm:$0xff]
        %v334 = vld [vmem:[#allocation5 + $0x28] sm:$0xff]
        %v335 = vld [vmem:[#allocation5 + $0x30] sm:$0xff]
        %v336 = vld [vmem:[#allocation5 + $0x38] sm:$0xff]
        %v337 = vld [vmem:[#allocation5 + $0x40] sm:$0xff]
        %v338 = vld [vmem:[#allocation5 + $0x48] sm:$0xff]
        %v339 = vld [vmem:[#allocation5 + $0x50] sm:$0xff]
        %v340 = vld [vmem:[#allocation5 + $0x58] sm:$0xff]
        %v341 = vld [vmem:[#allocation5 + $0x60] sm:$0xff]
        %v342 = vld [vmem:[#allocation5 + $0x68] sm:$0xff]
        %v343 = vld [vmem:[#allocation5 + $0x70] sm:$0xff]
        %v344 = vld [vmem:[#allocation5 + $0x78] sm:$0xff]
        %v345 = vld [vmem:[#allocation5 + $0x80] sm:$0xff]
        %v346 = vld [vmem:[#allocation5 + $0x88] sm:$0xff]
        %v347 = vld [vmem:[#allocation5 + $0x90] sm:$0xff]
        %v348 = vld [vmem:[#allocation5 + $0x98] sm:$0xff]
        %v349 = vld [vmem:[#allocation5 + $0xa0] sm:$0xff]
        %v350 = vld [vmem:[#allocation5 + $0xa8] sm:$0xff]
        %v351 = vld [vmem:[#allocation5 + $0xb0] sm:$0xff]
        %v352 = vld [vmem:[#allocation5 + $0xb8] sm:$0xff]
        %v353 = vld [vmem:[#allocation5 + $0xc0] sm:$0xff]
        %v354 = vld [vmem:[#allocation5 + $0xc8] sm:$0xff]
        %v355 = vld [vmem:[#allocation5 + $0xd0] sm:$0xff]
        %v356 = vld [vmem:[#allocation5 + $0xd8] sm:$0xff]
        %v357 = vld [vmem:[#allocation5 + $0xe0] sm:$0xff]
        %v358 = vld [vmem:[#allocation5 + $0xe8] sm:$0xff]
        %v359 = vld [vmem:[#allocation5 + $0xf0] sm:$0xff]
        %v360 = vld [vmem:[#allocation5 + $0xf8] sm:$0xff]
        %v361 = vld [vmem:[#allocation5 + $0x100] sm:$0xff]
        %v362 = vld [vmem:[#allocation5 + $0x108] sm:$0xff]
        %v363 = vld [vmem:[#allocation5 + $0x110] sm:$0xff]
        %v364 = vld [vmem:[#allocation5 + $0x118] sm:$0xff]
        %v365 = vld [vmem:[#allocation5 + $0x120] sm:$0xff]
        %v366 = vld [vmem:[#allocation5 + $0x128] sm:$0xff]
        %v367 = vld [vmem:[#allocation5 + $0x130] sm:$0xff]
        %v368 = vld [vmem:[#allocation5 + $0x138] sm:$0xff]
        %v369 = vld [vmem:[#allocation5 + $0x140] sm:$0xff]
        %v370 = vld [vmem:[#allocation5 + $0x148] sm:$0xff]
        %v371 = vld [vmem:[#allocation5 + $0x150] sm:$0xff]
        %v372 = vld [vmem:[#allocation5 + $0x158] sm:$0xff]
        %v373 = vld [vmem:[#allocation5 + $0x160] sm:$0xff]
        %v374 = vld [vmem:[#allocation5 + $0x168] sm:$0xff]
        %v375 = vld [vmem:[#allocation5 + $0x170] sm:$0xff]
        %v376 = vld [vmem:[#allocation5 + $0x178] sm:$0xff]
        %v377 = vld [vmem:[%s2] sm:$0x1]
        %v379 = vlaneseq
        %v380 = vshrl.u32 %v379, 7
        %v381 = vsub.s32 0, %v380
        %v382 = vrot.slane %v377, %v381
        %384 = vmatprep.subr.mxu0 0.0
        %385 = vmatpush1.msra.mxu0 %v329
        %386 = vmatprep.subr.mxu0 0.0
        %387 = vmatpush1.msra.mxu0 %v330
        %388 = vmatprep.subr.mxu0 0.0
        %389 = vmatpush1.msra.mxu0 %v331
        %390 = vmatprep.subr.mxu0 0.0
        %391 = vmatpush1.msra.mxu0 %v332
        %392 = vmatprep.subr.mxu0 0.0
        %393 = vmatpush1.msra.mxu0 %v333
        %394 = vmatprep.subr.mxu0 0.0
        %395 = vmatpush1.msra.mxu0 %v334
        %396 = vmatprep.subr.mxu0 0.0
        %397 = vmatpush1.msra.mxu0 %v335
        %398 = vmatprep.subr.mxu0 0.0
        %399 = vmatpush1.msra.mxu0 %v336
        %400 = vmatprep.subr.mxu0 0.0
        %401 = vmatpush1.msra.mxu0 %v337
        %402 = vmatprep.subr.mxu0 0.0
        %403 = vmatpush1.msra.mxu0 %v338
        %404 = vmatprep.subr.mxu0 0.0
        %405 = vmatpush1.msra.mxu0 %v339
        %406 = vmatprep.subr.mxu0 0.0
        %407 = vmatpush1.msra.mxu0 %v340
        %408 = vmatprep.subr.mxu0 0.0
        %409 = vmatpush1.msra.mxu0 %v341
        %410 = vmatprep.subr.mxu0 0.0
        %411 = vmatpush1.msra.mxu0 %v342
        %412 = vmatprep.subr.mxu0 0.0
        %413 = vmatpush1.msra.mxu0 %v343
        %414 = vmatprep.subr.mxu0 0.0
        %415 = vmatpush1.msra.mxu0 %v344
        %416 = vmatprep.subr.mxu0 0.0
        %417 = vmatpush1.msra.mxu0 %v345
        %418 = vmatprep.subr.mxu0 0.0
        %419 = vmatpush1.msra.mxu0 %v346
        %420 = vmatprep.subr.mxu0 0.0
        %421 = vmatpush1.msra.mxu0 %v347
        %422 = vmatprep.subr.mxu0 0.0
        %423 = vmatpush1.msra.mxu0 %v348
        %424 = vmatprep.subr.mxu0 0.0
        %425 = vmatpush1.msra.mxu0 %v349
        %426 = vmatprep.subr.mxu0 0.0
        %427 = vmatpush1.msra.mxu0 %v350
        %428 = vmatprep.subr.mxu0 0.0
        %429 = vmatpush1.msra.mxu0 %v351
        %430 = vmatprep.subr.mxu0 0.0
        %431 = vmatpush1.msra.mxu0 %v352
        %432 = vmatprep.subr.mxu0 0.0
        %433 = vmatpush1.msra.mxu0 %v353
        %434 = vmatprep.subr.mxu0 0.0
        %435 = vmatpush1.msra.mxu0 %v354
        %436 = vmatprep.subr.mxu0 0.0
        %437 = vmatpush1.msra.mxu0 %v355
        %438 = vmatprep.subr.mxu0 0.0
        %439 = vmatpush1.msra.mxu0 %v356
        %440 = vmatprep.subr.mxu0 0.0
        %441 = vmatpush1.msra.mxu0 %v357
        %442 = vmatprep.subr.mxu0 0.0
        %443 = vmatpush1.msra.mxu0 %v358
        %444 = vmatprep.subr.mxu0 0.0
        %445 = vmatpush1.msra.mxu0 %v359
        %446 = vmatprep.subr.mxu0 0.0
        %447 = vmatpush1.msra.mxu0 %v360
        %448 = vmatprep.mubr.f32.mxu0 %v305
        %449 = vmatmul.mubr.f32.gmra.mrb[0].mxu0 %v316
        %v450 = vpop.f32.mrb[0].mxu0
        %v451 = vadd.f32 %v382, %v450
        %v452 = vpop.f32.mrb[0].mxu0
        %453 = vmatprep.mubr.f32.mxu0 %v306
        %454 = vmatmul.mubr.f32.gmra.mrb[0].mxu0 %v317
        %v455 = vpop.f32.mrb[0].mxu0
        %v456 = vadd.f32 %v382, %v455
        %v457 = vpop.f32.mrb[0].mxu0
        %458 = vdwg.mxu0
        %459 = vmatprep.subr.mxu0 0.0
        %460 = vmatpush1.msra.mxu0 %v361
        %461 = vmatprep.subr.mxu0 0.0
        %462 = vmatpush1.msra.mxu0 %v362
        %463 = vmatprep.subr.mxu0 0.0
        %464 = vmatpush1.msra.mxu0 %v363
        %465 = vmatprep.subr.mxu0 0.0
        %466 = vmatpush1.msra.mxu0 %v364
        %467 = vmatprep.subr.mxu0 0.0
        %468 = vmatpush1.msra.mxu0 %v365
        %469 = vmatprep.subr.mxu0 0.0
        %470 = vmatpush1.msra.mxu0 %v366
        %471 = vmatprep.subr.mxu0 0.0
        %472 = vmatpush1.msra.mxu0 %v367
        %473 = vmatprep.subr.mxu0 0.0
        %474 = vmatpush1.msra.mxu0 %v368
        %475 = vmatprep.subr.mxu0 0.0
        %476 = vmatpush1.msra.mxu0 %v369
        %477 = vmatprep.subr.mxu0 0.0
        %478 = vmatpush1.msra.mxu0 %v370
        %479 = vmatprep.subr.mxu0 0.0
        %480 = vmatpush1.msra.mxu0 %v371
        %481 = vmatprep.subr.mxu0 0.0
        %482 = vmatpush1.msra.mxu0 %v372
        %483 = vmatprep.subr.mxu0 0.0
        %484 = vmatpush1.msra.mxu0 %v373
        %485 = vmatprep.subr.mxu0 0.0
        %486 = vmatpush1.msra.mxu0 %v374
        %487 = vmatprep.subr.mxu0 0.0
        %488 = vmatpush1.msra.mxu0 %v375
        %489 = vmatprep.subr.mxu0 0.0
        %490 = vmatpush1.msra.mxu0 %v376
        %491 = vmatprep.subr.mxu0 0.0
        %492 = vmatpush1.msra.mxu0 0.0
        %493 = vmatprep.subr.mxu0 0.0
        %494 = vmatpush1.msra.mxu0 0.0
        %495 = vmatprep.subr.mxu0 0.0
        %496 = vmatpush1.msra.mxu0 0.0
        %497 = vmatprep.subr.mxu0 0.0
        %498 = vmatpush1.msra.mxu0 0.0
        %499 = vmatprep.subr.mxu0 0.0
        %500 = vmatpush1.msra.mxu0 0.0
        %501 = vmatprep.subr.mxu0 0.0
        %502 = vmatpush1.msra.mxu0 0.0
        %503 = vmatprep.subr.mxu0 0.0
        %504 = vmatpush1.msra.mxu0 0.0
        %505 = vmatprep.subr.mxu0 0.0
        %506 = vmatpush1.msra.mxu0 0.0
        %507 = vmatprep.subr.mxu0 0.0
        %508 = vmatpush1.msra.mxu0 0.0
        %509 = vmatprep.subr.mxu0 0.0
        %510 = vmatpush1.msra.mxu0 0.0
        %511 = vmatprep.subr.mxu0 0.0
        %512 = vmatpush1.msra.mxu0 0.0
        %513 = vmatprep.subr.mxu0 0.0
        %514 = vmatpush1.msra.mxu0 0.0
        %515 = vmatprep.subr.mxu0 0.0
        %516 = vmatpush1.msra.mxu0 0.0
        %517 = vmatprep.subr.mxu0 0.0
        %518 = vmatpush1.msra.mxu0 0.0
        %519 = vmatprep.subr.mxu0 0.0
        %520 = vmatpush1.msra.mxu0 0.0
        %521 = vmatprep.subr.mxu0 0.0
        %522 = vmatpush1.msra.mxu0 0.0
        %523 = vmatprep.mubr.f32.mxu0 0.0
        %524 = vmatmul.mubr.f32.gmra.mrb[0].mxu0 %v327
        %v525 = vpop.f32.mrb[0].mxu0
        %v526 = vadd.f32 %v451, %v525
        %v527 = vpop.f32.mrb[0].mxu0
        %528 = vmatprep.mubr.f32.mxu0 0.0
        %529 = vmatmul.mubr.f32.gmra.mrb[0].mxu0 %v328
        %v530 = vpop.f32.mrb[0].mxu0
        %v531 = vadd.f32 %v456, %v530
        %v532 = vpop.f32.mrb[0].mxu0
        %533 = vdwg.mxu0
        %v534 = vmax.f32 %v526, 0.0
        %v535 = vmax.f32 %v531, 0.0
        %v536 = vrot.slane %v534, 7
        %v537 = vrot.slane %v535, 7
        %v538 = vsel %vm309, %v536, %v537
        %v539 = vsel %vm309, %v537, %v536
        %v540 = vsel %vm314, %v539, 0.0
        %v541 = vsel %vm315, %v538, 0.0
        %v542 = vrot.slane %v534, 1
        %v543 = vrot.slane %v535, 1
        %v544 = vsel %vm320, %v542, %v543
        %v545 = vsel %vm320, %v543, %v542
        %v546 = vsel %vm325, %v544, 0.0
        %v547 = vsel %vm326, %v545, 0.0
        %v548 = vld [vmem:[#allocation7] sm:$0xff]
        %v549 = vld [vmem:[#allocation7 + $0x8] sm:$0xff]
        %v550 = vld [vmem:[#allocation7 + $0x10] sm:$0xff]
        %v551 = vld [vmem:[#allocation7 + $0x18] sm:$0xff]
        %v552 = vld [vmem:[#allocation7 + $0x20] sm:$0xff]
        %v553 = vld [vmem:[#allocation7 + $0x28] sm:$0xff]
        %v554 = vld [vmem:[#allocation7 + $0x30] sm:$0xff]
        %v555 = vld [vmem:[#allocation7 + $0x38] sm:$0xff]
        %v556 = vld [vmem:[#allocation7 + $0x40] sm:$0xff]
        %v557 = vld [vmem:[#allocation7 + $0x48] sm:$0xff]
        %v558 = vld [vmem:[#allocation7 + $0x50] sm:$0xff]
        %v559 = vld [vmem:[#allocation7 + $0x58] sm:$0xff]
        %v560 = vld [vmem:[#allocation7 + $0x60] sm:$0xff]
        %v561 = vld [vmem:[#allocation7 + $0x68] sm:$0xff]
        %v562 = vld [vmem:[#allocation7 + $0x70] sm:$0xff]
        %v563 = vld [vmem:[#allocation7 + $0x78] sm:$0xff]
        %v564 = vld [vmem:[#allocation7 + $0x80] sm:$0xff]
        %v565 = vld [vmem:[#allocation7 + $0x88] sm:$0xff]
        %v566 = vld [vmem:[#allocation7 + $0x90] sm:$0xff]
        %v567 = vld [vmem:[#allocation7 + $0x98] sm:$0xff]
        %v568 = vld [vmem:[#allocation7 + $0xa0] sm:$0xff]
        %v569 = vld [vmem:[#allocation7 + $0xa8] sm:$0xff]
        %v570 = vld [vmem:[#allocation7 + $0xb0] sm:$0xff]
        %v571 = vld [vmem:[#allocation7 + $0xb8] sm:$0xff]
        %v572 = vld [vmem:[#allocation7 + $0xc0] sm:$0xff]
        %v573 = vld [vmem:[#allocation7 + $0xc8] sm:$0xff]
        %v574 = vld [vmem:[#allocation7 + $0xd0] sm:$0xff]
        %v575 = vld [vmem:[#allocation7 + $0xd8] sm:$0xff]
        %v576 = vld [vmem:[#allocation7 + $0xe0] sm:$0xff]
        %v577 = vld [vmem:[#allocation7 + $0xe8] sm:$0xff]
        %v578 = vld [vmem:[#allocation7 + $0xf0] sm:$0xff]
        %v579 = vld [vmem:[#allocation7 + $0xf8] sm:$0xff]
        %v580 = vld [vmem:[#allocation7 + $0x100] sm:$0xff]
        %v581 = vld [vmem:[#allocation7 + $0x108] sm:$0xff]
        %v582 = vld [vmem:[#allocation7 + $0x110] sm:$0xff]
        %v583 = vld [vmem:[#allocation7 + $0x118] sm:$0xff]
        %v584 = vld [vmem:[#allocation7 + $0x120] sm:$0xff]
        %v585 = vld [vmem:[#allocation7 + $0x128] sm:$0xff]
        %v586 = vld [vmem:[#allocation7 + $0x130] sm:$0xff]
        %v587 = vld [vmem:[#allocation7 + $0x138] sm:$0xff]
        %v588 = vld [vmem:[#allocation7 + $0x140] sm:$0xff]
        %v589 = vld [vmem:[#allocation7 + $0x148] sm:$0xff]
        %v590 = vld [vmem:[#allocation7 + $0x150] sm:$0xff]
        %v591 = vld [vmem:[#allocation7 + $0x158] sm:$0xff]
        %v592 = vld [vmem:[#allocation7 + $0x160] sm:$0xff]
        %v593 = vld [vmem:[#allocation7 + $0x168] sm:$0xff]
        %v594 = vld [vmem:[#allocation7 + $0x170] sm:$0xff]
        %v595 = vld [vmem:[#allocation7 + $0x178] sm:$0xff]
        %v596 = vld [vmem:[%s4] sm:$0x1]
        %v598 = vlaneseq
        %v599 = vshrl.u32 %v598, 7
        %v600 = vsub.s32 0, %v599
        %v601 = vrot.slane %v596, %v600
        %603 = vmatprep.subr.mxu0 0.0
        %604 = vmatpush1.msra.mxu0 %v548
        %605 = vmatprep.subr.mxu0 0.0
        %606 = vmatpush1.msra.mxu0 %v549
        %607 = vmatprep.subr.mxu0 0.0
        %608 = vmatpush1.msra.mxu0 %v550
        %609 = vmatprep.subr.mxu0 0.0
        %610 = vmatpush1.msra.mxu0 %v551
        %611 = vmatprep.subr.mxu0 0.0
        %612 = vmatpush1.msra.mxu0 %v552
        %613 = vmatprep.subr.mxu0 0.0
        %614 = vmatpush1.msra.mxu0 %v553
        %615 = vmatprep.subr.mxu0 0.0
        %616 = vmatpush1.msra.mxu0 %v554
        %617 = vmatprep.subr.mxu0 0.0
        %618 = vmatpush1.msra.mxu0 %v555
        %619 = vmatprep.subr.mxu0 0.0
        %620 = vmatpush1.msra.mxu0 %v556
        %621 = vmatprep.subr.mxu0 0.0
        %622 = vmatpush1.msra.mxu0 %v557
        %623 = vmatprep.subr.mxu0 0.0
        %624 = vmatpush1.msra.mxu0 %v558
        %625 = vmatprep.subr.mxu0 0.0
        %626 = vmatpush1.msra.mxu0 %v559
        %627 = vmatprep.subr.mxu0 0.0
        %628 = vmatpush1.msra.mxu0 %v560
        %629 = vmatprep.subr.mxu0 0.0
        %630 = vmatpush1.msra.mxu0 %v561
        %631 = vmatprep.subr.mxu0 0.0
        %632 = vmatpush1.msra.mxu0 %v562
        %633 = vmatprep.subr.mxu0 0.0
        %634 = vmatpush1.msra.mxu0 %v563
        %635 = vmatprep.subr.mxu0 0.0
        %636 = vmatpush1.msra.mxu0 %v564
        %637 = vmatprep.subr.mxu0 0.0
        %638 = vmatpush1.msra.mxu0 %v565
        %639 = vmatprep.subr.mxu0 0.0
        %640 = vmatpush1.msra.mxu0 %v566
        %641 = vmatprep.subr.mxu0 0.0
        %642 = vmatpush1.msra.mxu0 %v567
        %643 = vmatprep.subr.mxu0 0.0
        %644 = vmatpush1.msra.mxu0 %v568
        %645 = vmatprep.subr.mxu0 0.0
        %646 = vmatpush1.msra.mxu0 %v569
        %647 = vmatprep.subr.mxu0 0.0
        %648 = vmatpush1.msra.mxu0 %v570
        %649 = vmatprep.subr.mxu0 0.0
        %650 = vmatpush1.msra.mxu0 %v571
        %651 = vmatprep.subr.mxu0 0.0
        %652 = vmatpush1.msra.mxu0 %v572
        %653 = vmatprep.subr.mxu0 0.0
        %654 = vmatpush1.msra.mxu0 %v573
        %655 = vmatprep.subr.mxu0 0.0
        %656 = vmatpush1.msra.mxu0 %v574
        %657 = vmatprep.subr.mxu0 0.0
        %658 = vmatpush1.msra.mxu0 %v575
        %659 = vmatprep.subr.mxu0 0.0
        %660 = vmatpush1.msra.mxu0 %v576
        %661 = vmatprep.subr.mxu0 0.0
        %662 = vmatpush1.msra.mxu0 %v577
        %663 = vmatprep.subr.mxu0 0.0
        %664 = vmatpush1.msra.mxu0 %v578
        %665 = vmatprep.subr.mxu0 0.0
        %666 = vmatpush1.msra.mxu0 %v579
        %667 = vmatprep.mubr.f32.mxu0 %v534
        %668 = vmatmul.mubr.f32.gmra.mrb[0].mxu0 %v540
        %v669 = vpop.f32.mrb[0].mxu0
        %v670 = vadd.f32 %v601, %v669
        %v671 = vpop.f32.mrb[0].mxu0
        %672 = vmatprep.mubr.f32.mxu0 %v535
        %673 = vmatmul.mubr.f32.gmra.mrb[0].mxu0 %v541
        %v674 = vpop.f32.mrb[0].mxu0
        %v675 = vadd.f32 %v601, %v674
        %v676 = vpop.f32.mrb[0].mxu0
        %677 = vdwg.mxu0
        %678 = vmatprep.subr.mxu0 0.0
        %679 = vmatpush1.msra.mxu0 %v580
        %680 = vmatprep.subr.mxu0 0.0
        %681 = vmatpush1.msra.mxu0 %v581
        %682 = vmatprep.subr.mxu0 0.0
        %683 = vmatpush1.msra.mxu0 %v582
        %684 = vmatprep.subr.mxu0 0.0
        %685 = vmatpush1.msra.mxu0 %v583
        %686 = vmatprep.subr.mxu0 0.0
        %687 = vmatpush1.msra.mxu0 %v584
        %688 = vmatprep.subr.mxu0 0.0
        %689 = vmatpush1.msra.mxu0 %v585
        %690 = vmatprep.subr.mxu0 0.0
        %691 = vmatpush1.msra.mxu0 %v586
        %692 = vmatprep.subr.mxu0 0.0
        %693 = vmatpush1.msra.mxu0 %v587
        %694 = vmatprep.subr.mxu0 0.0
        %695 = vmatpush1.msra.mxu0 %v588
        %696 = vmatprep.subr.mxu0 0.0
        %697 = vmatpush1.msra.mxu0 %v589
        %698 = vmatprep.subr.mxu0 0.0
        %699 = vmatpush1.msra.mxu0 %v590
        %700 = vmatprep.subr.mxu0 0.0
        %701 = vmatpush1.msra.mxu0 %v591
        %702 = vmatprep.subr.mxu0 0.0
        %703 = vmatpush1.msra.mxu0 %v592
        %704 = vmatprep.subr.mxu0 0.0
        %705 = vmatpush1.msra.mxu0 %v593
        %706 = vmatprep.subr.mxu0 0.0
        %707 = vmatpush1.msra.mxu0 %v594
        %708 = vmatprep.subr.mxu0 0.0
        %709 = vmatpush1.msra.mxu0 %v595
        %710 = vmatprep.subr.mxu0 0.0
        %711 = vmatpush1.msra.mxu0 0.0
        %712 = vmatprep.subr.mxu0 0.0
        %713 = vmatpush1.msra.mxu0 0.0
        %714 = vmatprep.subr.mxu0 0.0
        %715 = vmatpush1.msra.mxu0 0.0
        %716 = vmatprep.subr.mxu0 0.0
        %717 = vmatpush1.msra.mxu0 0.0
        %718 = vmatprep.subr.mxu0 0.0
        %719 = vmatpush1.msra.mxu0 0.0
        %720 = vmatprep.subr.mxu0 0.0
        %721 = vmatpush1.msra.mxu0 0.0
        %722 = vmatprep.subr.mxu0 0.0
        %723 = vmatpush1.msra.mxu0 0.0
        %724 = vmatprep.subr.mxu0 0.0
        %725 = vmatpush1.msra.mxu0 0.0
        %726 = vmatprep.subr.mxu0 0.0
        %727 = vmatpush1.msra.mxu0 0.0
        %728 = vmatprep.subr.mxu0 0.0
        %729 = vmatpush1.msra.mxu0 0.0
        %730 = vmatprep.subr.mxu0 0.0
        %731 = vmatpush1.msra.mxu0 0.0
        %732 = vmatprep.subr.mxu0 0.0
        %733 = vmatpush1.msra.mxu0 0.0
        %734 = vmatprep.subr.mxu0 0.0
        %735 = vmatpush1.msra.mxu0 0.0
        %736 = vmatprep.subr.mxu0 0.0
        %737 = vmatpush1.msra.mxu0 0.0
        %738 = vmatprep.subr.mxu0 0.0
        %739 = vmatpush1.msra.mxu0 0.0
        %740 = vmatprep.subr.mxu0 0.0
        %741 = vmatpush1.msra.mxu0 0.0
        %742 = vmatprep.mubr.f32.mxu0 0.0
        %743 = vmatmul.mubr.f32.gmra.mrb[0].mxu0 %v546
        %v744 = vpop.f32.mrb[0].mxu0
        %v745 = vadd.f32 %v670, %v744
        %v746 = vpop.f32.mrb[0].mxu0
        %747 = vmatprep.mubr.f32.mxu0 0.0
        %748 = vmatmul.mubr.f32.gmra.mrb[0].mxu0 %v547
        %v749 = vpop.f32.mrb[0].mxu0
        %v750 = vadd.f32 %v675, %v749
        %v751 = vpop.f32.mrb[0].mxu0
        %752 = vdwg.mxu0
        %v753 = vmax.f32 %v745, 0.0
        %v754 = vmax.f32 %v750, 0.0
        %755 = vst [vmem:[%s271] sm:$0xff] %v753
        %756 = vst [vmem:[%s271 + $0x8] sm:$0xff] %v754
        %s757 = sand.u32 %s141, 1
        %s758 = scalar_lea.sflag [#allocation4], %s757
        %s759 = sand.u32 %s141, 1
        %s760 = smul.addr %s759, 16
        %s761 = scalar_lea.vmem [#allocation8], %s760
        // Predicated region
        $region53: #{tpu_custom_call.1} parent=39 // pred_check
          %p762 = pneg %p151
        $region54: #{tpu_custom_call.1} parent=39 // pred_check_branch
          %764 = sbr.rel (%p762) target = $region56
        $region55: #{tpu_custom_call.1} parent=39 // pred_region
          %s765 = smul.u32 2, %s23
          %s767 = ssub.s32 256, 256
          %768 = vsyncadd %s758, %s767
          %s769 = smul.addr %s765, 128
          %s770 = scalar_lea.hbm %s5, %s769
          %s771 = sshll.u32 %s761, 4
          %s772 = int_to_ptr.vmem [resolvable:$true] %s771
          %777 = dma.vmem_to_hbm [thread:$0]  %s772, 256, %s770, %s758, 128, 128, 8
        $region56: #{tpu_custom_call.1} parent=39 // pred_fallthru
          _
      $region40: #{tpu_custom_call.1} parent=5 // pred_fallthru
        _
      %p778 = scmp.le.s32.totalorder 2, %s18
      // Predicated region
      $region57: #{tpu_custom_call.1} parent=5 // pred_check
        %p779 = pneg %p778
      $region58: #{tpu_custom_call.1} parent=5 // pred_check_branch
        %781 = sbr.rel (%p779) target = $region60
      $region59: #{tpu_custom_call.1} parent=5 // pred_region
        %s782 = ssub.s32 %s18, 2
        // Predicated region
        $region61: #{tpu_custom_call.1} parent=59 // pred_check
          %p783 = pneg %p157
        $region62: #{tpu_custom_call.1} parent=59 // pred_check_branch
          %785 = sbr.rel (%p783) target = $region64
        $region63: #{tpu_custom_call.1} parent=59 // pred_region
          %s786 = sand.u32 %s142, 1
          %s787 = scalar_lea.sflag [#allocation4], %s786
          %s788 = sand.u32 %s142, 1
          %s789 = smul.addr %s788, 16
          %s790 = scalar_lea.vmem [#allocation8], %s789
          %791 = dma.done %s787, 256
        $region64: #{tpu_custom_call.1} parent=59 // pred_fallthru
          _
      $region60: #{tpu_custom_call.1} parent=5 // pred_fallthru
        _
    $region6: #{tpu_custom_call.1} parent=1 // loop_footer
      %s22 = sadd.s32 1, %s18
    $region7: #{tpu_custom_call.1} parent=1 // loop_footer_branch
      %17 = sbr.rel target = $region3
    $region8: #{tpu_custom_call.1} parent=1 // loop_exit
      _
    %792 = vsyncpa [#allocation3], 1
    %s793 = scalar_lea.sflag [#allocation3], 1
    %794 = vsyncpa %s793, 1
    %795 = vsyncpa [#allocation6], 1
    %796 = vsyncpa [#allocation4], 1
    %s797 = scalar_lea.sflag [#allocation4], 1
    %798 = vsyncpa %s797, 1

</llo_original>
